<compile_context>
chip_gen: v7x
topology: tpu7x:2x2x1
jax: 0.10.0
libtpu: 0.0.40
codegen_flags: <defaults>
</compile_context>

<pallas_src>
import functools

import numpy as np
import jax
import jax.numpy as jnp
from jax.experimental import pallas as pl
from jax.experimental.pallas import tpu as pltpu

LANE = 128
SUB = 8
_SMEM_SPEC = pl.BlockSpec(memory_space=pltpu.MemorySpace.SMEM)
# Safe on all generations (v5e default scoped 16 MiB / physical 128; v6e 32/128;
# v7x 32/64).  Our per-step footprint stays ~5 MiB with double buffering.
_VMEM_LIMIT = 32 * 1024 * 1024


def _pick_sublane_tile(nr, bytes_per_row, target_bytes=2 << 20):
    """Largest divisor of nr (multiple of 8, preferably 32) whose x-block is
    <= target_bytes, so each grid step streams a multi-MiB tile."""
    cap = max(SUB, int(target_bytes // max(1, bytes_per_row)))
    if nr <= cap:
        return nr
    best8 = best32 = None
    for t in range(SUB, cap + 1, SUB):
        if nr % t == 0:
            best8 = t
            if t % 32 == 0:
                best32 = t
    return best32 or best8 or nr


# ----------------------------------------------------------------------------
# Kernel 1: fused pointwise-conv diff + packed (mistake, gts>0) uint8 mask.
#   xg_ref: (1, C+1, TS, 128)  original channels + gts, voxels (8,128)-dense
#   pk_ref: (1, TS, 128) uint8: bit1 = (gts>0) != seg, bit0 = gts>0
# ----------------------------------------------------------------------------
def _mistakes_kernel(w_ref, b_ref, xg_ref, pk_ref, *, c_in):
    acc = xg_ref[0, 0, :, :] * (w_ref[0, 1] - w_ref[0, 0])
    for c in range(1, c_in):
        acc = acc + xg_ref[0, c, :, :] * (w_ref[c, 1] - w_ref[c, 0])
    seg = (acc + (b_ref[1] - b_ref[0])) > 0.0          # diff(logits) > 0
    gt = xg_ref[0, c_in, :, :] > 0.0
    mis = gt != seg
    pk_ref[0, :, :] = (jnp.where(mis, 2, 0) + jnp.where(gt, 1, 0)).astype(jnp.uint8)


def mistakes_pass(xg4, w, b):
    B, c_tot, NR, _ = xg4.shape
    c_in = c_tot - 1
    ts = _pick_sublane_tile(NR, c_tot * LANE * 4)
    grid = (B, NR // ts)
    xg_spec = pl.BlockSpec((1, c_tot, ts, LANE), lambda bb, nn: (bb, 0, nn, 0))
    pk_spec = pl.BlockSpec((1, ts, LANE), lambda bb, nn: (bb, nn, 0))
    return pl.pallas_call(
        functools.partial(_mistakes_kernel, c_in=c_in),
        out_shape=jax.ShapeDtypeStruct((B, NR, LANE), jnp.uint8),
        grid=grid,
        in_specs=[_SMEM_SPEC, _SMEM_SPEC, xg_spec],
        out_specs=pk_spec,
        compiler_params=pltpu.CompilerParams(
            dimension_semantics=("parallel", "parallel"),
            vmem_limit_bytes=_VMEM_LIMIT),
    )(w, b, xg4)


# ----------------------------------------------------------------------------
# Kernel 2: final pointwise conv with, optionally, the channel overrides
#   x[:,1] <- prev-seg mask (recomputed in-kernel from the ORIGINAL x),
#   x[:,C-4] / x[:,C-3] <- positive / negative click spheres (computed
#   in-kernel from <=5 click coords in SMEM)
# all fused in — no seg/pos/neg HBM round trips.
# ----------------------------------------------------------------------------
def _final_conv_kernel(*refs, c_in, n_out, override, n_clicks,
                       hw_size, w_dim, radius_sq):
    if n_clicks > 0:
        w_ref, b_ref, coords_ref, flags_ref, x_ref, o_ref = refs
    else:
        w_ref, b_ref, x_ref, o_ref = refs
    shp = o_ref.shape[2:]                         # (TS, 128) — full vregs
    ts = shp[0]

    seg_f = None
    if override:
        # Recompute prev-seg mask from the original x: 7 FMAs/voxel beats an
        # 8-bytes/voxel f32 HBM round trip on every generation.
        sacc = x_ref[0, 0, :, :] * (w_ref[0, 1] - w_ref[0, 0])
        for c in range(1, c_in):
            sacc = sacc + x_ref[0, c, :, :] * (w_ref[c, 1] - w_ref[c, 0])
        seg_f = ((sacc + (b_ref[1] - b_ref[0])) > 0.0).astype(jnp.float32)

    pos_f = neg_f = None
    if n_clicks > 0:
        bb = pl.program_id(0)
        nn = pl.program_id(1)
        s = jax.lax.broadcasted_iota(jnp.int32, shp, 0)
        l = jax.lax.broadcasted_iota(jnp.int32, shp, 1)
        r_idx = nn * ts + s                       # global sublane-row index
        # (z, y, x) decomposition once per tile (not per click); keep divide
        # operands small; power-of-two dims lower to shifts.
        if hw_size % LANE == 0:
            q = hw_size // LANE
            z = r_idx // q
            rem = (r_idx - z * q) * LANE + l
        else:
            n_lin = r_idx * LANE + l
            z = n_lin // hw_size
            rem = n_lin - z * hw_size
        yy = rem // w_dim
        xx = rem - yy * w_dim
        zf = z.astype(jnp.float32)
        yf = yy.astype(jnp.float32)
        xf = xx.astype(jnp.float32)
        pos = jnp.zeros(shp, dtype=jnp.bool_)
        neg = jnp.zeros(shp, dtype=jnp.bool_)
        for k in range(n_clicks):                 # K <= 5, unrolled
            row = bb * n_clicks + k
            fl = flags_ref[row]                   # 0: skip, 1: negative, 2: positive
            dz = zf - coords_ref[row, 0]
            dy = yf - coords_ref[row, 1]
            dx = xf - coords_ref[row, 2]
            d2 = dz * dz + dy * dy + dx * dx
            # fold the flag gate into the threshold: -1 disables (d2 >= 0)
            thr_p = jnp.where(fl == 2, radius_sq, -1.0)
            thr_n = jnp.where(fl == 1, radius_sq, -1.0)
            pos = pos | (d2 < thr_p)
            neg = neg | (d2 < thr_n)
        pos_f = pos.astype(jnp.float32)
        neg_f = neg.astype(jnp.float32)

    # pointwise conv: channel-outer / output-inner, bias added once at the end
    accs = [None] * n_out
    for c in range(c_in):
        if override and c == c_in - 4:
            xc = pos_f                             # None => channel is all zeros
        elif override and c == c_in - 3:
            xc = neg_f
        elif override and c == 1:
            xc = seg_f
        else:
            xc = x_ref[0, c, :, :]
        if xc is None:
            continue
        for o in range(n_out):
            t = xc * w_ref[c, o]
            accs[o] = t if accs[o] is None else accs[o] + t
    for o in range(n_out):
        o_ref[0, o, :, :] = accs[o] + b_ref[o]


def final_conv(xg4, w, b, *, vol_shape, radius, override=False,
               coords=None, flags=None, n_clicks=0):
    B, c_tot, NR, _ = xg4.shape
    c_in = c_tot - 1
    n_out = w.shape[1]
    D, H, W = vol_shape
    ts = _pick_sublane_tile(NR, c_in * LANE * 4)
    grid = (B, NR // ts)
    x_spec = pl.BlockSpec((1, c_in, ts, LANE), lambda bb, nn: (bb, 0, nn, 0))
    o_spec = pl.BlockSpec((1, n_out, ts, LANE), lambda bb, nn: (bb, 0, nn, 0))
    kern = functools.partial(
        _final_conv_kernel, c_in=c_in, n_out=n_out, override=override,
        n_clicks=n_clicks, hw_size=H * W, w_dim=W, radius_sq=float(radius) ** 2)
    in_specs = [_SMEM_SPEC, _SMEM_SPEC]
    args = [w, b]
    if n_clicks > 0:
        in_specs += [_SMEM_SPEC, _SMEM_SPEC]
        args += [coords, flags]
    in_specs.append(x_spec)
    args.append(xg4)
    return pl.pallas_call(
        kern,
        out_shape=jax.ShapeDtypeStruct((B, n_out, NR, LANE), jnp.float32),
        grid=grid,
        in_specs=in_specs,
        out_specs=o_spec,
        compiler_params=pltpu.CompilerParams(
            dimension_semantics=("parallel", "parallel"),
            vmem_limit_bytes=_VMEM_LIMIT),
    )(*args)


# ----------------------------------------------------------------------------
# Forward pass of ModelPrevSegAndClickWrapper (host-side glue).
# ----------------------------------------------------------------------------
def model_prev_seg_and_click_forward(x_and_gts, params, n_max_clicks=5,
                                     click_radius=4, rng_seed=0,
                                     n_clicks_override=None, return_debug=False):
    B, c_tot, D, H, W = x_and_gts.shape
    N = D * H * W
    n_out = params["w"].shape[1]

    # NCDHW is already channel-major with voxels contiguous: reshape to the
    # vreg-dense (rows, 128-lane) layout; pad the row count to a multiple of 8.
    pad = (-N) % (LANE * SUB)
    xg = x_and_gts.reshape(B, c_tot, N)
    if pad:
        xg = jnp.pad(xg, ((0, 0), (0, 0), (0, pad)))
    NR = (N + pad) // LANE
    xg4 = xg.reshape(B, c_tot, NR, LANE)

    w = params["w"].astype(jnp.float32)          # (C, 2) pointwise-conv weights
    b = params["b"].astype(jnp.float32)          # (2,)

    rng = np.random.default_rng(rng_seed)
    if n_clicks_override is None:
        probs = [0.5] + [0.5 / max(1, n_max_clicks)] * n_max_clicks
        n_clicks = int(rng.choice(np.arange(n_max_clicks + 1), p=probs))
    else:
        n_clicks = int(n_clicks_override)

    debug = {"n_clicks": n_clicks, "coords": None, "flags": None}

    def _reshape_out(logits4):
        lg = logits4.reshape(B, n_out, NR * LANE)
        if pad:
            lg = lg[:, :, :N]
        return lg.reshape(B, n_out, D, H, W)

    if n_clicks == 0:
        out = [_reshape_out(final_conv(xg4, w, b, vol_shape=(D, H, W),
                                       radius=click_radius))]
        return (out, debug) if return_debug else out

    # Stage 1: fused conv-diff + packed uint8 (mistake, gts>0) mask.
    packed = mistakes_pass(xg4, w, b)
    # Single device->host sync, 1 byte/voxel (vs 8 bytes for two f32 volumes).
    packed_np = np.asarray(jax.device_get(packed)).reshape(B, -1)[:, :N]

    coords = flags = None
    if (packed_np >= 2).any():
        coords_np = np.zeros((B, n_clicks, 3), dtype=np.float32)
        flags_np = np.zeros((B, n_clicks), dtype=np.int32)
        for i in range(B):
            err_idx = np.flatnonzero(packed_np[i] >= 2)
            if err_idx.size == 0:
                continue
            # TODO(synk): cc3d.connected_components + EDT + random center sampling
            # have no Pallas/JAX equivalent; sample random erroneous voxels per
            # click instead (seeded, deterministic).
            picks = rng.choice(err_idx, size=n_clicks, replace=True)
            for k, p in enumerate(picks):
                z, y, xx = np.unravel_index(int(p), (D, H, W))
                coords_np[i, k] = (z, y, xx)
                flags_np[i, k] = 2 if (packed_np[i, p] & 1) else 1   # 2=pos, 1=neg
        coords = jnp.asarray(coords_np.reshape(B * n_clicks, 3))
        flags = jnp.asarray(flags_np.reshape(B * n_clicks))
        debug["coords"] = coords_np
        debug["flags"] = flags_np

    # Stage 2: final conv with seg + click-sphere channel overrides fused
    # in-kernel (no pos/neg/seg round trips; no zero volumes when no mistakes).
    logits4 = final_conv(
        xg4, w, b, vol_shape=(D, H, W), radius=click_radius, override=True,
        coords=coords, flags=flags,
        n_clicks=(n_clicks if coords is not None else 0))
    out = [_reshape_out(logits4)]
    return (out, debug) if return_debug else out


def init_params(key, c_in, n_seg_classes=2):
    kw, _ = jax.random.split(key)
    w = 0.1 * jax.random.normal(kw, (c_in, n_seg_classes), dtype=jnp.float32)
    b = jnp.zeros((n_seg_classes,), dtype=jnp.float32)
    return {"w": w, "b": b}


if __name__ == "__main__":
    key = jax.random.PRNGKey(0)
    B, C_IN, D, H, W = 2, 7, 8, 16, 16        # x has 7 channels, +1 gts channel
    k1, k2, k3 = jax.random.split(key, 3)

    x = jax.random.normal(k1, (B, C_IN, D, H, W), dtype=jnp.float32)
    gts = (jax.random.uniform(k2, (B, 1, D, H, W)) > 0.7).astype(jnp.float32)
    x_and_gts = jnp.concatenate([x, gts], axis=1)          # (2, 8, 8, 16, 16)

    params = init_params(k3, C_IN, n_seg_classes=2)
    w_np = np.asarray(params["w"])
    b_np = np.asarray(params["b"])
    x_np = np.asarray(x)

    def ref_conv(x5):
        return (np.einsum("bcdhw,co->bodhw", x5, w_np)
                + b_np[None, :, None, None, None])

    # ---- click path (stage-1 kernel + fused final conv with overrides) ----
    R = 4
    out, dbg = model_prev_seg_and_click_forward(
        x_and_gts, params, n_max_clicks=5, click_radius=R,
        n_clicks_override=3, return_debug=True)
    logits = np.asarray(jax.block_until_ready(out[0]))
    assert logits.shape == (B, 2, D, H, W)
    assert np.all(np.isfinite(logits))

    # pure-numpy reference of the same forward (same click coords / flags)
    logits0 = ref_conv(x_np)
    seg = (logits0[:, 1] - logits0[:, 0]) > 0.0
    x_mod = x_np.copy()
    x_mod[:, 1] = seg.astype(np.float32)
    pos = np.zeros((B, D, H, W), bool)
    neg = np.zeros((B, D, H, W), bool)
    if dbg["coords"] is not None:
        zz, yy, xx = np.meshgrid(np.arange(D), np.arange(H), np.arange(W),
                                 indexing="ij")
        for i in range(B):
            for k in range(dbg["n_clicks"]):
                fl = dbg["flags"][i, k]
                if fl == 0:
                    continue
                cz, cy, cx = dbg["coords"][i, k]
                d2 = (zz - cz) ** 2 + (yy - cy) ** 2 + (xx - cx) ** 2
                m = d2 < R * R
                if fl == 2:
                    pos[i] |= m
                else:
                    neg[i] |= m
    x_mod[:, -4] = pos.astype(np.float32)
    x_mod[:, -3] = neg.astype(np.float32)
    ref = ref_conv(x_mod)
    assert np.allclose(logits, ref, rtol=1e-4, atol=1e-4), np.abs(logits - ref).max()

    # ---- no-click path (plain fused conv) ----
    out0 = model_prev_seg_and_click_forward(
        x_and_gts, params, n_max_clicks=5, click_radius=R, n_clicks_override=0)
    logits_nc = np.asarray(jax.block_until_ready(out0[0]))
    assert logits_nc.shape == (B, 2, D, H, W)
    assert np.allclose(logits_nc, ref_conv(x_np), rtol=1e-4, atol=1e-4)

    print("KERNEL_OK")
</pallas_src>

<mosaic_0001>
module attributes {stable_mosaic.version = 11 : i64} {
  func.func @_mistakes_kernel(%arg0: i32, %arg1: i32, %arg2: memref<7x2xf32, #tpu.memory_space<smem>>, %arg3: memref<2xf32, #tpu.memory_space<smem>>, %arg4: memref<1x8x16x128xf32, #tpu.memory_space<vmem>>, %arg5: memref<1x16x128xi8, #tpu.memory_space<vmem>>) attributes {dimension_semantics = [#tpu.dimension_semantics<parallel>, #tpu.dimension_semantics<parallel>], iteration_bounds = array<i64: 2, 1>, scalar_prefetch = 0 : i64, scratch_operands = 0 : i64, tpu.core_type = #tpu.core_type<tc>, window_params = [{transform_indices = @transform_0, window_bounds = array<i64: 7, 2>}, {transform_indices = @transform_1, window_bounds = array<i64: 2>}, {transform_indices = @transform_2, window_bounds = array<i64: 1, 8, 16, 128>}, {transform_indices = @transform_3, window_bounds = array<i64: 1, 16, 128>}]} {
    %c0 = arith.constant 0 : index
    %c0_0 = arith.constant 0 : index
    %c0_1 = arith.constant 0 : index
    %c0_2 = arith.constant 0 : index
    %0 = vector.load %arg4[%c0, %c0_0, %c0_1, %c0_2] : memref<1x8x16x128xf32, #tpu.memory_space<vmem>>, vector<1x1x16x128xf32>
    %1 = vector.shape_cast %0 : vector<1x1x16x128xf32> to vector<16x128xf32>
    %c0_3 = arith.constant 0 : index
    %c1 = arith.constant 1 : index
    %2 = memref.load %arg2[%c0_3, %c1] : memref<7x2xf32, #tpu.memory_space<smem>>
    %c0_4 = arith.constant 0 : index
    %c0_5 = arith.constant 0 : index
    %3 = memref.load %arg2[%c0_4, %c0_5] : memref<7x2xf32, #tpu.memory_space<smem>>
    %4 = arith.subf %2, %3 : f32
    %5 = vector.broadcast %4 : f32 to vector<16x128xf32>
    %6 = arith.mulf %1, %5 : vector<16x128xf32>
    %c0_6 = arith.constant 0 : index
    %c1_7 = arith.constant 1 : index
    %c0_8 = arith.constant 0 : index
    %c0_9 = arith.constant 0 : index
    %7 = vector.load %arg4[%c0_6, %c1_7, %c0_8, %c0_9] : memref<1x8x16x128xf32, #tpu.memory_space<vmem>>, vector<1x1x16x128xf32>
    %8 = vector.shape_cast %7 : vector<1x1x16x128xf32> to vector<16x128xf32>
    %c1_10 = arith.constant 1 : index
    %c1_11 = arith.constant 1 : index
    %9 = memref.load %arg2[%c1_10, %c1_11] : memref<7x2xf32, #tpu.memory_space<smem>>
    %c1_12 = arith.constant 1 : index
    %c0_13 = arith.constant 0 : index
    %10 = memref.load %arg2[%c1_12, %c0_13] : memref<7x2xf32, #tpu.memory_space<smem>>
    %11 = arith.subf %9, %10 : f32
    %12 = vector.broadcast %11 : f32 to vector<16x128xf32>
    %13 = arith.mulf %8, %12 : vector<16x128xf32>
    %14 = arith.addf %6, %13 : vector<16x128xf32>
    %c0_14 = arith.constant 0 : index
    %c2 = arith.constant 2 : index
    %c0_15 = arith.constant 0 : index
    %c0_16 = arith.constant 0 : index
    %15 = vector.load %arg4[%c0_14, %c2, %c0_15, %c0_16] : memref<1x8x16x128xf32, #tpu.memory_space<vmem>>, vector<1x1x16x128xf32>
    %16 = vector.shape_cast %15 : vector<1x1x16x128xf32> to vector<16x128xf32>
    %c2_17 = arith.constant 2 : index
    %c1_18 = arith.constant 1 : index
    %17 = memref.load %arg2[%c2_17, %c1_18] : memref<7x2xf32, #tpu.memory_space<smem>>
    %c2_19 = arith.constant 2 : index
    %c0_20 = arith.constant 0 : index
    %18 = memref.load %arg2[%c2_19, %c0_20] : memref<7x2xf32, #tpu.memory_space<smem>>
    %19 = arith.subf %17, %18 : f32
    %20 = vector.broadcast %19 : f32 to vector<16x128xf32>
    %21 = arith.mulf %16, %20 : vector<16x128xf32>
    %22 = arith.addf %14, %21 : vector<16x128xf32>
    %c0_21 = arith.constant 0 : index
    %c3 = arith.constant 3 : index
    %c0_22 = arith.constant 0 : index
    %c0_23 = arith.constant 0 : index
    %23 = vector.load %arg4[%c0_21, %c3, %c0_22, %c0_23] : memref<1x8x16x128xf32, #tpu.memory_space<vmem>>, vector<1x1x16x128xf32>
    %24 = vector.shape_cast %23 : vector<1x1x16x128xf32> to vector<16x128xf32>
    %c3_24 = arith.constant 3 : index
    %c1_25 = arith.constant 1 : index
    %25 = memref.load %arg2[%c3_24, %c1_25] : memref<7x2xf32, #tpu.memory_space<smem>>
    %c3_26 = arith.constant 3 : index
    %c0_27 = arith.constant 0 : index
    %26 = memref.load %arg2[%c3_26, %c0_27] : memref<7x2xf32, #tpu.memory_space<smem>>
    %27 = arith.subf %25, %26 : f32
    %28 = vector.broadcast %27 : f32 to vector<16x128xf32>
    %29 = arith.mulf %24, %28 : vector<16x128xf32>
    %30 = arith.addf %22, %29 : vector<16x128xf32>
    %c0_28 = arith.constant 0 : index
    %c4 = arith.constant 4 : index
    %c0_29 = arith.constant 0 : index
    %c0_30 = arith.constant 0 : index
    %31 = vector.load %arg4[%c0_28, %c4, %c0_29, %c0_30] : memref<1x8x16x128xf32, #tpu.memory_space<vmem>>, vector<1x1x16x128xf32>
    %32 = vector.shape_cast %31 : vector<1x1x16x128xf32> to vector<16x128xf32>
    %c4_31 = arith.constant 4 : index
    %c1_32 = arith.constant 1 : index
    %33 = memref.load %arg2[%c4_31, %c1_32] : memref<7x2xf32, #tpu.memory_space<smem>>
    %c4_33 = arith.constant 4 : index
    %c0_34 = arith.constant 0 : index
    %34 = memref.load %arg2[%c4_33, %c0_34] : memref<7x2xf32, #tpu.memory_space<smem>>
    %35 = arith.subf %33, %34 : f32
    %36 = vector.broadcast %35 : f32 to vector<16x128xf32>
    %37 = arith.mulf %32, %36 : vector<16x128xf32>
    %38 = arith.addf %30, %37 : vector<16x128xf32>
    %c0_35 = arith.constant 0 : index
    %c5 = arith.constant 5 : index
    %c0_36 = arith.constant 0 : index
    %c0_37 = arith.constant 0 : index
    %39 = vector.load %arg4[%c0_35, %c5, %c0_36, %c0_37] : memref<1x8x16x128xf32, #tpu.memory_space<vmem>>, vector<1x1x16x128xf32>
    %40 = vector.shape_cast %39 : vector<1x1x16x128xf32> to vector<16x128xf32>
    %c5_38 = arith.constant 5 : index
    %c1_39 = arith.constant 1 : index
    %41 = memref.load %arg2[%c5_38, %c1_39] : memref<7x2xf32, #tpu.memory_space<smem>>
    %c5_40 = arith.constant 5 : index
    %c0_41 = arith.constant 0 : index
    %42 = memref.load %arg2[%c5_40, %c0_41] : memref<7x2xf32, #tpu.memory_space<smem>>
    %43 = arith.subf %41, %42 : f32
    %44 = vector.broadcast %43 : f32 to vector<16x128xf32>
    %45 = arith.mulf %40, %44 : vector<16x128xf32>
    %46 = arith.addf %38, %45 : vector<16x128xf32>
    %c0_42 = arith.constant 0 : index
    %c6 = arith.constant 6 : index
    %c0_43 = arith.constant 0 : index
    %c0_44 = arith.constant 0 : index
    %47 = vector.load %arg4[%c0_42, %c6, %c0_43, %c0_44] : memref<1x8x16x128xf32, #tpu.memory_space<vmem>>, vector<1x1x16x128xf32>
    %48 = vector.shape_cast %47 : vector<1x1x16x128xf32> to vector<16x128xf32>
    %c6_45 = arith.constant 6 : index
    %c1_46 = arith.constant 1 : index
    %49 = memref.load %arg2[%c6_45, %c1_46] : memref<7x2xf32, #tpu.memory_space<smem>>
    %c6_47 = arith.constant 6 : index
    %c0_48 = arith.constant 0 : index
    %50 = memref.load %arg2[%c6_47, %c0_48] : memref<7x2xf32, #tpu.memory_space<smem>>
    %51 = arith.subf %49, %50 : f32
    %52 = vector.broadcast %51 : f32 to vector<16x128xf32>
    %53 = arith.mulf %48, %52 : vector<16x128xf32>
    %54 = arith.addf %46, %53 : vector<16x128xf32>
    %c1_49 = arith.constant 1 : index
    %55 = memref.load %arg3[%c1_49] : memref<2xf32, #tpu.memory_space<smem>>
    %c0_50 = arith.constant 0 : index
    %56 = memref.load %arg3[%c0_50] : memref<2xf32, #tpu.memory_space<smem>>
    %57 = arith.subf %55, %56 : f32
    %58 = vector.broadcast %57 : f32 to vector<16x128xf32>
    %59 = arith.addf %54, %58 : vector<16x128xf32>
    %cst = arith.constant 0.000000e+00 : f32
    %60 = vector.broadcast %cst : f32 to vector<16x128xf32>
    %61 = arith.cmpf ogt, %59, %60 : vector<16x128xf32>
    %c0_51 = arith.constant 0 : index
    %c7 = arith.constant 7 : index
    %c0_52 = arith.constant 0 : index
    %c0_53 = arith.constant 0 : index
    %62 = vector.load %arg4[%c0_51, %c7, %c0_52, %c0_53] : memref<1x8x16x128xf32, #tpu.memory_space<vmem>>, vector<1x1x16x128xf32>
    %63 = vector.shape_cast %62 : vector<1x1x16x128xf32> to vector<16x128xf32>
    %cst_54 = arith.constant 0.000000e+00 : f32
    %64 = vector.broadcast %cst_54 : f32 to vector<16x128xf32>
    %65 = arith.cmpf ogt, %63, %64 : vector<16x128xf32>
    %66 = arith.xori %65, %61 : vector<16x128xi1>
    %c2_i32 = arith.constant 2 : i32
    %c0_i32 = arith.constant 0 : i32
    %67 = vector.broadcast %c2_i32 : i32 to vector<16x128xi32>
    %68 = vector.broadcast %c0_i32 : i32 to vector<16x128xi32>
    %69 = arith.select %66, %67, %68 : vector<16x128xi1>, vector<16x128xi32>
    %c1_i32 = arith.constant 1 : i32
    %c0_i32_55 = arith.constant 0 : i32
    %70 = vector.broadcast %c1_i32 : i32 to vector<16x128xi32>
    %71 = vector.broadcast %c0_i32_55 : i32 to vector<16x128xi32>
    %72 = arith.select %65, %70, %71 : vector<16x128xi1>, vector<16x128xi32>
    %73 = arith.addi %69, %72 : vector<16x128xi32>
    %74 = arith.trunci %73 : vector<16x128xi32> to vector<16x128xi8>
    %c0_56 = arith.constant 0 : index
    %c0_57 = arith.constant 0 : index
    %c0_58 = arith.constant 0 : index
    %75 = vector.load %arg5[%c0_56, %c0_57, %c0_58] : memref<1x16x128xi8, #tpu.memory_space<vmem>>, vector<1x16x128xi8>
    %76 = vector.shape_cast %75 : vector<1x16x128xi8> to vector<16x128xi8>
    %77 = vector.shape_cast %74 : vector<16x128xi8> to vector<1x16x128xi8>
    tpu.vector_store %arg5[%c0_56, %c0_57, %c0_58], %77 {strides = array<i32>} : memref<1x16x128xi8, #tpu.memory_space<vmem>>, vector<1x16x128xi8>,
    return
  }
  func.func @transform_0(%arg0: i32, %arg1: i32) -> (i32, i32) {
    %c0_i32 = arith.constant 0 : i32
    %c0_i32_0 = arith.constant 0 : i32
    %c0_i32_1 = arith.constant 0 : i32
    return %c0_i32, %c0_i32_0 : i32, i32
  }
  func.func @transform_1(%arg0: i32, %arg1: i32) -> i32 {
    %c0_i32 = arith.constant 0 : i32
    %c0_i32_0 = arith.constant 0 : i32
    return %c0_i32 : i32
  }
  func.func @transform_2(%arg0: i32, %arg1: i32) -> (i32, i32, i32, i32) {
    %c0_i32 = arith.constant 0 : i32
    %c0_i32_0 = arith.constant 0 : i32
    %c0_i32_1 = arith.constant 0 : i32
    return %arg0, %c0_i32, %arg1, %c0_i32_0 : i32, i32, i32, i32
  }
  func.func @transform_3(%arg0: i32, %arg1: i32) -> (i32, i32, i32) {
    %c0_i32 = arith.constant 0 : i32
    %c0_i32_0 = arith.constant 0 : i32
    return %arg0, %arg1, %c0_i32 : i32, i32, i32
  }
}

</mosaic_0001>

<llo_original>
// kernel: tpu_custom_call.1
$region0: #{tpu_custom_call.1}
  #allocation0 [shape = 'u32[]', space=smem, size = 0x4, offset = 0x4, fixed_abs, tag = 'smem constant byte address 0x4 - core index']
  #allocation1 [shape = 'u32[144,128]{1,0:T(1,128)}', space=vmem, size = 0x12000, scoped, tag = 'internal scratch']
  %s0 = inlined_call_operand.vmem [shape: f32[7,2], index: 0, kind: input, shape index: {}]
  %s1 = inlined_call_operand.vmem [shape: f32[2], index: 1, kind: input, shape index: {}]
  %s2 = inlined_call_operand.hbm [shape: f32[2,8,16,128], index: 2, kind: input, shape index: {}]
  %s3 = inlined_call_operand.hbm [shape: u8[2,16,128], index: 3, kind: output, shape index: {}]
  %s4 = sld [smem:[#allocation0]]
  $region57: #{tpu_custom_call.1} parent=0
    _
  %s6 = ssub.s32 1, %s4
  %s7 = scalar_select 0, %s6, %s4
  $region1: #{tpu_custom_call.1} parent=0
    #allocation2 [shape = 'u8[4096]{0}', space=smem, size = 0x1000, scoped, tag = 'input window, operand 0, single buffered']
    #allocation3 [shape = 's32[2]{0}', space=sflag, size = 0x8, scoped, tag = 'scoped memory for tpu_custom_call.1']
    #allocation4 [shape = 's32[2]{0}', space=sflag, size = 0x8, scoped, tag = 'scoped memory for tpu_custom_call.1']
    #allocation5 [shape = 's32[2]{0}', space=sflag, size = 0x8, scoped, tag = 'scoped memory for tpu_custom_call.1']
    #allocation6 [shape = 'u8[512]{0}', space=smem, size = 0x200, scoped, tag = 'input window, operand 1, single buffered']
    #allocation7 [shape = 's32[1]{0}', space=sflag, size = 0x4, scoped, tag = 'scoped memory for tpu_custom_call.1']
    #allocation8 [shape = 'u8[131072]{0}', space=vmem, size = 0x20000, scoped, tag = 'input window, operand 2']
    #allocation9 [shape = 'u8[4096]{0}', space=vmem, size = 0x1000, scoped, tag = 'output window, operand 0']
    %8 = vsyncpa [#allocation5], 0
    %9 = vsyncpa [#allocation7], 0
    %10 = vsyncpa [#allocation3], 0
    %s11 = scalar_lea.sflag [#allocation3], 1
    %12 = vsyncpa %s11, 0
    %13 = vsyncpa [#allocation4], 0
    %s14 = scalar_lea.sflag [#allocation4], 1
    %15 = vsyncpa %s14, 0
    loop: start=0, step=1, limit=4
    $region2: #{tpu_custom_call.1} parent=1 // loop_pre_header
      _
    $region3: #{tpu_custom_call.1} parent=1 // loop_header
      %s17 = sphi 0, %s21
      %p18 = scmp.ge.s32.totalorder %s17, 4
      %s24 = sphi 0, %s36
      %s25 = sphi 0, %s32
      %s26 = sphi 0, %s24
      %s27 = sphi 0, %s25
      %s28 = sphi 0, %s26
      %s29 = sphi 0, %s27
      %s37 = sphi 0, %s37
      %s39 = sphi 0, %s37
      %s40 = sphi 0, %s39
      %s54 = sphi 0, %s40
      %s58 = sphi 0, %s58
      %s60 = sphi 0, %s58
      %s61 = sphi 0, %s60
      %s75 = sphi 0, %s61
      %s83 = sphi 0, %s85
      %s86 = sphi 0, %s83
      %s87 = sphi 0, %s86
      %s103 = sphi 0, %s87
      %s111 = sphi 0, %s113
      %s114 = sphi 0, %s111
      %s115 = sphi 0, %s114
      %s131 = sphi 0, %s115
    $region4: #{tpu_custom_call.1} parent=1 // loop_header_branch
      %20 = sbr.rel (%p18) target = $region8
    $region5: #{tpu_custom_call.1} parent=1 // loop_body
      %s22 = ssub.s32 %s17, 1
      %s23 = ssub.s32 %s17, 2
      %s30 = sadd.s32 1, %s25
      %p31 = scmp.ge.s32.totalorder %s30, 1
      %s32 = scalar_select %p31, 0, %s30
      %s33 = sadd.s32 1, %s24
      %s34 = scalar_select %p31, %s33, %s24
      %p35 = scmp.ge.s32.totalorder %s34, 2
      %s36 = scalar_select %p35, 0, %s34
      %s38 = sadd.s32 %s37, 1
      %p41 = scmp.eq.s32.totalorder %s17, 1
      %p42 = scmp.ne.s32.totalorder %s37, %s39
      %p43 = scmp.eq.s32.totalorder %s17, 0
      %p44 = por %p42, %p43
      %p45 = scmp.ne.s32.totalorder %s37, %s39
      %p46 = scmp.eq.s32.totalorder %s22, 1
      %p47 = por %p45, %p46
      %p48 = scmp.ne.s32.totalorder %s39, %s40
      %p49 = scmp.eq.s32.totalorder %s22, 0
      %p50 = por %p48, %p49
      %p51 = scmp.ne.s32.totalorder %s39, %s40
      %p52 = scmp.eq.s32.totalorder %s23, 1
      %p53 = por %p51, %p52
      %p55 = scmp.ne.s32.totalorder %s40, %s54
      %p56 = scmp.eq.s32.totalorder %s23, 0
      %p57 = por %p55, %p56
      %s59 = sadd.s32 %s58, 1
      %p62 = scmp.eq.s32.totalorder %s17, 1
      %p63 = scmp.ne.s32.totalorder %s58, %s60
      %p64 = scmp.eq.s32.totalorder %s17, 0
      %p65 = por %p63, %p64
      %p66 = scmp.ne.s32.totalorder %s58, %s60
      %p67 = scmp.eq.s32.totalorder %s22, 1
      %p68 = por %p66, %p67
      %p69 = scmp.ne.s32.totalorder %s60, %s61
      %p70 = scmp.eq.s32.totalorder %s22, 0
      %p71 = por %p69, %p70
      %p72 = scmp.ne.s32.totalorder %s60, %s61
      %p73 = scmp.eq.s32.totalorder %s23, 1
      %p74 = por %p72, %p73
      %p76 = scmp.ne.s32.totalorder %s61, %s75
      %p77 = scmp.eq.s32.totalorder %s23, 0
      %p78 = por %p76, %p77
      %s79 = ssub.s32 %s24, %s36
      %s80 = ssub.s32 %s25, %s32
      %s81 = sor.u32 %s79, %s80
      %p82 = scmp.eq.s32.totalorder %s81, 0
      %s84 = sadd.s32 %s83, 1
      %s85 = scalar_select %p82, %s83, %s84
      %p88 = pneg %p82
      %p89 = scmp.eq.s32.totalorder %s17, 1
      %p90 = por %p88, %p89
      %p91 = scmp.ne.s32.totalorder %s83, %s86
      %p92 = scmp.eq.s32.totalorder %s17, 0
      %p93 = por %p91, %p92
      %p94 = scmp.ne.s32.totalorder %s83, %s86
      %p95 = scmp.eq.s32.totalorder %s22, 1
      %p96 = por %p94, %p95
      %p97 = scmp.ne.s32.totalorder %s86, %s87
      %p98 = scmp.eq.s32.totalorder %s22, 0
      %p99 = por %p97, %p98
      %p100 = scmp.ne.s32.totalorder %s86, %s87
      %p101 = scmp.eq.s32.totalorder %s23, 1
      %p102 = por %p100, %p101
      %p104 = scmp.ne.s32.totalorder %s87, %s103
      %p105 = scmp.eq.s32.totalorder %s23, 0
      %p106 = por %p104, %p105
      %s107 = ssub.s32 %s24, %s36
      %s108 = ssub.s32 %s25, %s32
      %s109 = sor.u32 %s107, %s108
      %p110 = scmp.eq.s32.totalorder %s109, 0
      %s112 = sadd.s32 %s111, 1
      %s113 = scalar_select %p110, %s111, %s112
      %p116 = pneg %p110
      %p117 = scmp.eq.s32.totalorder %s17, 1
      %p118 = por %p116, %p117
      %p119 = scmp.ne.s32.totalorder %s111, %s114
      %p120 = scmp.eq.s32.totalorder %s17, 0
      %p121 = por %p119, %p120
      %p122 = scmp.ne.s32.totalorder %s111, %s114
      %p123 = scmp.eq.s32.totalorder %s22, 1
      %p124 = por %p122, %p123
      %p125 = scmp.ne.s32.totalorder %s114, %s115
      %p126 = scmp.eq.s32.totalorder %s22, 0
      %p127 = por %p125, %p126
      %p128 = scmp.ne.s32.totalorder %s114, %s115
      %p129 = scmp.eq.s32.totalorder %s23, 1
      %p130 = por %p128, %p129
      %p132 = scmp.ne.s32.totalorder %s115, %s131
      %p133 = scmp.eq.s32.totalorder %s23, 0
      %p134 = por %p132, %p133
      %p135 = scmp.le.s32.totalorder 1, %s17
      %p136 = scmp.lt.s32.totalorder %s17, 3
      %p137 = pnand %p135, %p136
      %p138 = pneg %p137
      // Predicated region
      $region9: #{tpu_custom_call.1} parent=5 // pred_check
        _
      $region10: #{tpu_custom_call.1} parent=5 // pred_check_branch
        %140 = sbr.rel (%p137) target = $region12
      $region11: #{tpu_custom_call.1} parent=5 // pred_region
        %s141 = ssub.s32 %s17, 1
        // Predicated region
        $region13: #{tpu_custom_call.1} parent=11 // pred_check
          %p142 = pneg %p50
        $region14: #{tpu_custom_call.1} parent=11 // pred_check_branch
          %144 = sbr.rel (%p142) target = $region16
        $region15: #{tpu_custom_call.1} parent=11 // pred_region
          %s146 = ssub.s32 128, 128
          %147 = vsyncadd [#allocation5], %s146
          %s149 = sshll.u32 %s0, 4
          %s150 = int_to_ptr.vmem [resolvable:$true] %s149
          %152 = dma.vmem_to_smem %s150, 128, [#allocation2], [#allocation5]
        $region16: #{tpu_custom_call.1} parent=11 // pred_fallthru
          _
        // Predicated region
        $region17: #{tpu_custom_call.1} parent=11 // pred_check
          %p153 = pneg %p71
        $region18: #{tpu_custom_call.1} parent=11 // pred_check_branch
          %155 = sbr.rel (%p153) target = $region20
        $region19: #{tpu_custom_call.1} parent=11 // pred_region
          %s157 = ssub.s32 16, 16
          %158 = vsyncadd [#allocation7], %s157
          %s160 = sshll.u32 %s1, 4
          %s161 = int_to_ptr.vmem [resolvable:$true] %s160
          %163 = dma.vmem_to_smem %s161, 16, [#allocation6], [#allocation7]
        $region20: #{tpu_custom_call.1} parent=11 // pred_fallthru
          _
      $region12: #{tpu_custom_call.1} parent=5 // pred_fallthru
        _
      %p164 = scmp.lt.s32.totalorder %s17, 2
      // Predicated region
      $region21: #{tpu_custom_call.1} parent=5 // pred_check
        %p165 = pneg %p164
      $region22: #{tpu_custom_call.1} parent=5 // pred_check_branch
        %167 = sbr.rel (%p165) target = $region24
      $region23: #{tpu_custom_call.1} parent=5 // pred_region
        // Predicated region
        $region25: #{tpu_custom_call.1} parent=23 // pred_check
          %p168 = pneg %p93
        $region26: #{tpu_custom_call.1} parent=23 // pred_check_branch
          %170 = sbr.rel (%p168) target = $region28
        $region27: #{tpu_custom_call.1} parent=23 // pred_region
          %s171 = sand.u32 %s83, 1
          %s172 = scalar_lea.sflag [#allocation3], %s171
          %s173 = sand.u32 %s83, 1
          %s174 = smul.addr %s173, 128
          %s175 = scalar_lea.vmem [#allocation8], %s174
          %s176 = smul.u32 2, %s25
          %s178 = ssub.s32 2048, 2048
          %179 = vsyncadd %s172, %s178
          %s180 = smul.addr %s24, 16
          %s181 = sadd.s32 %s176, %s180
          %s182 = smul.addr %s181, 128
          %s183 = scalar_lea.hbm %s2, %s182
          %s184 = sshll.u32 %s175, 4
          %s185 = int_to_ptr.vmem [resolvable:$true] %s184
          %190 = dma.hbm_to_vmem [thread:$0]  %s183, 2048, %s185, %s172, 128, 128, 8
        $region28: #{tpu_custom_call.1} parent=23 // pred_fallthru
          _
      $region24: #{tpu_custom_call.1} parent=5 // pred_fallthru
        _
      %p191 = scmp.le.s32.totalorder 1, %s17
      %p192 = scmp.lt.s32.totalorder %s17, 3
      %p193 = pnand %p191, %p192
      %p194 = pneg %p193
      // Predicated region
      $region29: #{tpu_custom_call.1} parent=5 // pred_check
        _
      $region30: #{tpu_custom_call.1} parent=5 // pred_check_branch
        %196 = sbr.rel (%p193) target = $region32
      $region31: #{tpu_custom_call.1} parent=5 // pred_region
        %s197 = ssub.s32 %s17, 1
        // Predicated region
        $region33: #{tpu_custom_call.1} parent=31 // pred_check
          %p198 = pneg %p50
        $region34: #{tpu_custom_call.1} parent=31 // pred_check_branch
          %200 = sbr.rel (%p198) target = $region36
        $region35: #{tpu_custom_call.1} parent=31 // pred_region
          %201 = dma.done [#allocation5], 128
        $region36: #{tpu_custom_call.1} parent=31 // pred_fallthru
          _
        // Predicated region
        $region37: #{tpu_custom_call.1} parent=31 // pred_check
          %p202 = pneg %p71
        $region38: #{tpu_custom_call.1} parent=31 // pred_check_branch
          %204 = sbr.rel (%p202) target = $region40
        $region39: #{tpu_custom_call.1} parent=31 // pred_region
          %205 = dma.done [#allocation7], 16
        $region40: #{tpu_custom_call.1} parent=31 // pred_fallthru
          _
        %s206 = sand.u32 %s86, 1
        %s207 = scalar_lea.sflag [#allocation3], %s206
        %s208 = sand.u32 %s86, 1
        %s209 = smul.addr %s208, 128
        %s210 = scalar_lea.vmem [#allocation8], %s209
        // Predicated region
        $region41: #{tpu_custom_call.1} parent=31 // pred_check
          %p211 = pneg %p99
        $region42: #{tpu_custom_call.1} parent=31 // pred_check_branch
          %213 = sbr.rel (%p211) target = $region44
        $region43: #{tpu_custom_call.1} parent=31 // pred_region
          %214 = dma.done %s207, 2048
        $region44: #{tpu_custom_call.1} parent=31 // pred_fallthru
          _
        %215 = sfence
        %p216 = pneg %p50
        %p217 = pneg %p47
        %p218 = pneg %p71
        %p219 = pneg %p68
        %s220 = sand.u32 %s86, 1
        %s221 = scalar_lea.sflag [#allocation3], %s220
        %s222 = sand.u32 %s86, 1
        %s223 = smul.addr %s222, 128
        %s224 = scalar_lea.vmem [#allocation8], %s223
        %p225 = pneg %p99
        %p226 = pneg %p96
        %p227 = pneg %p127
        %p228 = pneg %p124
        %s229 = sand.u32 %s114, 1
        %s230 = scalar_lea.sflag [#allocation4], %s229
        %s231 = sand.u32 %s114, 1
        %s232 = smul.addr %s231, 4
        %s233 = scalar_lea.vmem [#allocation9], %s232
        %s234 = smul.u32 2, %s27
        %s235 = smul.u32 2, %s27
        %v236 = vld [vmem:[%s210] sm:$0xff]
        %v237 = vld [vmem:[%s210 + $0x8] sm:$0xff]
        %s238 = sld [smem:[#allocation2 + $0x1]]
        %s239 = sld [smem:[#allocation2]]
        %s240 = ssub.f32 %s238, %s239
        %v241 = vstv %s240
        %v242 = vmul.f32 %v236, %v241
        %v243 = vmul.f32 %v237, %v241
        %s244 = scalar_lea.vmem %s210, 16 [#allocation8]
        %v245 = vld [vmem:[%s244] sm:$0xff]
        %v246 = vld [vmem:[%s244 + $0x8] sm:$0xff]
        %s247 = sld [smem:[#allocation2 + $0x81]]
        %s248 = sld [smem:[#allocation2 + $0x80]]
        %s249 = ssub.f32 %s247, %s248
        %v250 = vstv %s249
        %v251 = vmul.f32 %v245, %v250
        %v252 = vmul.f32 %v246, %v250
        %v253 = vadd.f32 %v242, %v251
        %v254 = vadd.f32 %v243, %v252
        %s255 = scalar_lea.vmem %s210, 32 [#allocation8]
        %v256 = vld [vmem:[%s255] sm:$0xff]
        %v257 = vld [vmem:[%s255 + $0x8] sm:$0xff]
        %s258 = sld [smem:[#allocation2 + $0x101]]
        %s259 = sld [smem:[#allocation2 + $0x100]]
        %s260 = ssub.f32 %s258, %s259
        %v261 = vstv %s260
        %v262 = vmul.f32 %v256, %v261
        %v263 = vmul.f32 %v257, %v261
        %v264 = vadd.f32 %v253, %v262
        %v265 = vadd.f32 %v254, %v263
        %s266 = scalar_lea.vmem %s210, 48 [#allocation8]
        %v267 = vld [vmem:[%s266] sm:$0xff]
        %v268 = vld [vmem:[%s266 + $0x8] sm:$0xff]
        %s269 = sld [smem:[#allocation2 + $0x181]]
        %s270 = sld [smem:[#allocation2 + $0x180]]
        %s271 = ssub.f32 %s269, %s270
        %v272 = vstv %s271
        %v273 = vmul.f32 %v267, %v272
        %v274 = vmul.f32 %v268, %v272
        %v275 = vadd.f32 %v264, %v273
        %v276 = vadd.f32 %v265, %v274
        %s277 = scalar_lea.vmem %s210, 64 [#allocation8]
        %v278 = vld [vmem:[%s277] sm:$0xff]
        %v279 = vld [vmem:[%s277 + $0x8] sm:$0xff]
        %s280 = sld [smem:[#allocation2 + $0x201]]
        %s281 = sld [smem:[#allocation2 + $0x200]]
        %s282 = ssub.f32 %s280, %s281
        %v283 = vstv %s282
        %v284 = vmul.f32 %v278, %v283
        %v285 = vmul.f32 %v279, %v283
        %v286 = vadd.f32 %v275, %v284
        %v287 = vadd.f32 %v276, %v285
        %s288 = scalar_lea.vmem %s210, 80 [#allocation8]
        %v289 = vld [vmem:[%s288] sm:$0xff]
        %v290 = vld [vmem:[%s288 + $0x8] sm:$0xff]
        %s291 = sld [smem:[#allocation2 + $0x281]]
        %s292 = sld [smem:[#allocation2 + $0x280]]
        %s293 = ssub.f32 %s291, %s292
        %v294 = vstv %s293
        %v295 = vmul.f32 %v289, %v294
        %v296 = vmul.f32 %v290, %v294
        %v297 = vadd.f32 %v286, %v295
        %v298 = vadd.f32 %v287, %v296
        %s299 = scalar_lea.vmem %s210, 96 [#allocation8]
        %v300 = vld [vmem:[%s299] sm:$0xff]
        %v301 = vld [vmem:[%s299 + $0x8] sm:$0xff]
        %s302 = sld [smem:[#allocation2 + $0x301]]
        %s303 = sld [smem:[#allocation2 + $0x300]]
        %s304 = ssub.f32 %s302, %s303
        %v305 = vstv %s304
        %v306 = vmul.f32 %v300, %v305
        %v307 = vmul.f32 %v301, %v305
        %v308 = vadd.f32 %v297, %v306
        %v309 = vadd.f32 %v298, %v307
        %s310 = sld [smem:[#allocation6 + $0x1]]
        %s311 = sld [smem:[#allocation6]]
        %s312 = ssub.f32 %s310, %s311
        %v313 = vstv %s312
        %v314 = vadd.f32 %v308, %v313
        %v315 = vadd.f32 %v309, %v313
        %vm316 = vcmp.gt.f32.partialorder %v314, 0.0
        %vm317 = vcmp.gt.f32.partialorder %v315, 0.0
        %s318 = scalar_lea.vmem %s210, 112 [#allocation8]
        %v319 = vld [vmem:[%s318] sm:$0xff]
        %v320 = vld [vmem:[%s318 + $0x8] sm:$0xff]
        %vm321 = vcmp.gt.f32.partialorder %v319, 0.0
        %vm322 = vcmp.gt.f32.partialorder %v320, 0.0
        %vm323 = vmxor %vm321, %vm316
        %vm324 = vmxor %vm322, %vm317
        %v325 = vsel %vm323, 2, 0
        %v326 = vsel %vm324, 2, 0
        %v327 = vsel %vm321, 1, 0
        %v328 = vsel %vm322, 1, 0
        %v329 = vadd.s32 %v325, %v327
        %v330 = vadd.s32 %v326, %v328
        %v331 = vpack.c.b16 %v329, %v329
        %v332 = vpack.c.b8 %v331, %v331
        %v333 = vpack.c.b16 %v330, %v330
        %v334 = vpack.c.b8 %v333, %v333
        %335 = vst [vmem:[%s233] sm:$0x3] %v332
        %336 = vst [vmem:[%s233 + $0x2] sm:$0x3] %v334
        %s337 = sand.u32 %s114, 1
        %s338 = scalar_lea.sflag [#allocation4], %s337
        %s339 = sand.u32 %s114, 1
        %s340 = smul.addr %s339, 4
        %s341 = scalar_lea.vmem [#allocation9], %s340
        // Predicated region
        $region45: #{tpu_custom_call.1} parent=31 // pred_check
          %p342 = pneg %p124
        $region46: #{tpu_custom_call.1} parent=31 // pred_check_branch
          %344 = sbr.rel (%p342) target = $region48
        $region47: #{tpu_custom_call.1} parent=31 // pred_region
          %s345 = smul.u32 2, %s27
          %s347 = ssub.s32 64, 64
          %348 = vsyncadd %s338, %s347
          %s349 = smul.addr %s26, 2
          %s350 = sadd.s32 %s345, %s349
          %s351 = smul.addr %s350, 32
          %s352 = scalar_lea.hbm %s3, %s351
          %s353 = sshll.u32 %s341, 4
          %s354 = int_to_ptr.vmem [resolvable:$true] %s353
          %359 = dma.vmem_to_hbm [thread:$0]  %s354, 64, %s352, %s338, 32, 32, 2
        $region48: #{tpu_custom_call.1} parent=31 // pred_fallthru
          _
      $region32: #{tpu_custom_call.1} parent=5 // pred_fallthru
        _
      %p360 = scmp.le.s32.totalorder 2, %s17
      // Predicated region
      $region49: #{tpu_custom_call.1} parent=5 // pred_check
        %p361 = pneg %p360
      $region50: #{tpu_custom_call.1} parent=5 // pred_check_branch
        %363 = sbr.rel (%p361) target = $region52
      $region51: #{tpu_custom_call.1} parent=5 // pred_region
        %s364 = ssub.s32 %s17, 2
        // Predicated region
        $region53: #{tpu_custom_call.1} parent=51 // pred_check
          %p365 = pneg %p130
        $region54: #{tpu_custom_call.1} parent=51 // pred_check_branch
          %367 = sbr.rel (%p365) target = $region56
        $region55: #{tpu_custom_call.1} parent=51 // pred_region
          %s368 = sand.u32 %s115, 1
          %s369 = scalar_lea.sflag [#allocation4], %s368
          %s370 = sand.u32 %s115, 1
          %s371 = smul.addr %s370, 4
          %s372 = scalar_lea.vmem [#allocation9], %s371
          %373 = dma.done %s369, 64
        $region56: #{tpu_custom_call.1} parent=51 // pred_fallthru
          _
      $region52: #{tpu_custom_call.1} parent=5 // pred_fallthru
        _
    $region6: #{tpu_custom_call.1} parent=1 // loop_footer
      %s21 = sadd.s32 1, %s17
    $region7: #{tpu_custom_call.1} parent=1 // loop_footer_branch
      %16 = sbr.rel target = $region3
    $region8: #{tpu_custom_call.1} parent=1 // loop_exit
      _
    %374 = vsyncpa [#allocation3], 1
    %s375 = scalar_lea.sflag [#allocation3], 1
    %376 = vsyncpa %s375, 1
    %377 = vsyncpa [#allocation4], 1
    %s378 = scalar_lea.sflag [#allocation4], 1
    %379 = vsyncpa %s378, 1
    %380 = vsyncpa [#allocation5], 1
    %s381 = scalar_lea.sflag [#allocation5], 1
    %382 = vsyncpa %s381, 1
    %383 = vsyncpa [#allocation7], 1

</llo_original>
